<compile_context>
chip_gen: v5e
topology: v5e:2x2
jax: 0.10.0
libtpu: 0.0.40
codegen_flags: <defaults>
</compile_context>

<pallas_src>
import jax
import jax.numpy as jnp
from jax.experimental import pallas as pl
from jax.experimental.pallas import tpu as pltpu

LANE = 128      # lane width / output padding target
SUBLANE = 8     # sublane granularity for row tiles


def _round_up(n, m):
    return ((n + m - 1) // m) * m


def _pick_tile_n(n, requested=1024, min_tile=256):
    """Row tile: as large as possible, but keep >= 2-4 grid steps when N allows."""
    n_aligned = _round_up(max(n, SUBLANE), SUBLANE)
    tile = min(_round_up(requested, SUBLANE), n_aligned)
    for steps in (4, 2):                 # prefer 4 steps (2 per TC on v7x), else 2
        cand = _round_up(pl.cdiv(n_aligned, steps), SUBLANE)
        if cand >= min_tile:
            tile = min(tile, cand)
            break
    return tile


def _vmem_budget_bytes(tile_n, d_in, h1, o_pad):
    """Generous upper bound on VMEM residency (lane/sublane padded, double buffers)."""
    lane = lambda v: _round_up(v, LANE)
    x_tile = 2 * tile_n * lane(d_in) * 4        # f32 input tile, double-buffered
    out_tile = 2 * tile_n * lane(o_pad) * 2     # bf16 output tile, double-buffered
    w1 = 2 * _round_up(d_in, 16) * lane(h1) * 2
    w2 = 2 * _round_up(h1, 16) * lane(o_pad) * 2
    b1 = 2 * SUBLANE * lane(h1) * 4
    b2 = 2 * SUBLANE * lane(o_pad) * 4
    h_im = tile_n * lane(h1) * 4                # f32 hidden activations
    return x_tile + out_tile + w1 + w2 + b1 + b2 + h_im


def _mlp_kernel(x_ref, w1_ref, b1_ref, w2_ref, b2_ref, o_ref):
    # x arrives once from HBM as f32; the bf16 cast is free VPU filler here.
    x_bf = x_ref[...].astype(jnp.bfloat16)
    # h = relu(x @ W1 + b1): bf16 MXU operands, f32 accumulation, f32 epilogue.
    h = jnp.dot(x_bf, w1_ref[...], preferred_element_type=jnp.float32)
    h = jnp.maximum(h + b1_ref[...], 0.0)
    # u = h @ W2 + b2: cast h to bf16 for the MXU, accumulate in f32.
    u = jnp.dot(h.astype(jnp.bfloat16), w2_ref[...],
                preferred_element_type=jnp.float32)
    # Single f32 -> bf16 pack at the final lane-dense, full-width store.
    o_ref[...] = (u + b2_ref[...]).astype(o_ref.dtype)


def prepare_params(w1_t, b1, w2_t, b2):
    """One-time layout prep (call once at init, NOT per forward pass).

    Weights cast to bf16; contraction dims left unpadded.  Only W2/b2's output
    lane dim is zero-padded to 128 so the kernel's output slab is lane-dense.
    Zero padding is exact (padded output columns are sliced off).
    """
    d_in, h1 = w1_t.shape
    out_dim = w2_t.shape[1]
    o_pad = _round_up(out_dim, LANE)
    w1_p = w1_t.astype(jnp.bfloat16)                                    # (D_in, H1)
    b1_p = b1.reshape(1, h1).astype(jnp.float32)                        # (1, H1)
    w2_p = jnp.zeros((h1, o_pad), jnp.bfloat16).at[:, :out_dim].set(
        w2_t.astype(jnp.bfloat16))                                      # (H1, 128)
    b2_p = jnp.zeros((1, o_pad), jnp.float32).at[0, :out_dim].set(
        b2.reshape(-1).astype(jnp.float32))                             # (1, 128)
    return {"w1": w1_p, "b1": b1_p, "w2": w2_p, "b2": b2_p, "out_dim": out_dim}


def two_layer_net(x, params, *, tile_n=1024):
    """Fused forward pass: relu(x @ W1 + b1) @ W2 + b2 -> (N, out_dim) f32."""
    w1_p, b1_p, w2_p, b2_p = params["w1"], params["b1"], params["w2"], params["b2"]
    out_dim = params["out_dim"]
    n, d_in = x.shape
    h1 = w1_p.shape[1]
    o_pad = w2_p.shape[1]

    tile = _pick_tile_n(n, tile_n)
    grid = (pl.cdiv(n, tile),)

    flops = 2 * n * d_in * h1 + 2 * n * h1 * o_pad
    bytes_accessed = (x.size * 4 + w1_p.size * 2 + w2_p.size * 2
                      + b1_p.size * 4 + b2_p.size * 4 + n * o_pad * 2)
    vmem_limit = max(8 << 20,
                     min(48 << 20,
                         int(1.25 * _vmem_budget_bytes(tile, d_in, h1, o_pad)) + (4 << 20)))

    out_padded = pl.pallas_call(
        _mlp_kernel,
        out_shape=jax.ShapeDtypeStruct((n, o_pad), jnp.bfloat16),
        grid_spec=pltpu.PrefetchScalarGridSpec(
            num_scalar_prefetch=0,
            grid=grid,
            in_specs=[
                pl.BlockSpec((tile, d_in), lambda i: (i, 0)),   # x: unpadded f32, tiled over N
                pl.BlockSpec((d_in, h1), lambda i: (0, 0)),     # W1: resident, unpadded
                pl.BlockSpec((1, h1), lambda i: (0, 0)),        # b1: resident
                pl.BlockSpec((h1, o_pad), lambda i: (0, 0)),    # W2: resident, lane-padded out dim
                pl.BlockSpec((1, o_pad), lambda i: (0, 0)),     # b2: resident
            ],
            out_specs=pl.BlockSpec((tile, o_pad), lambda i: (i, 0)),
        ),
        compiler_params=pltpu.CompilerParams(
            dimension_semantics=("parallel",),        # shard N across TCs on v7x
            vmem_limit_bytes=vmem_limit,
        ),
        cost_estimate=pl.CostEstimate(flops=flops, transcendentals=0,
                                      bytes_accessed=bytes_accessed),
    )(x, w1_p, b1_p, w2_p, b2_p)

    # Slice off lane padding, upcast the bf16 slab back to f32.
    return out_padded[:, :out_dim].astype(jnp.float32)


def init_params(key, d_in, h1, out_dim=2, dtype=jnp.float32):
    """torch.nn.Linear-style init U(-1/sqrt(fan_in), +1/sqrt(fan_in)); weights stored transposed."""
    k1, k2, k3, k4 = jax.random.split(key, 4)
    bound1 = 1.0 / (d_in ** 0.5)
    bound2 = 1.0 / (h1 ** 0.5)
    w1_t = jax.random.uniform(k1, (d_in, h1), dtype, minval=-bound1, maxval=bound1)
    b1 = jax.random.uniform(k2, (h1,), dtype, minval=-bound1, maxval=bound1)
    w2_t = jax.random.uniform(k3, (h1, out_dim), dtype, minval=-bound2, maxval=bound2)
    b2 = jax.random.uniform(k4, (out_dim,), dtype, minval=-bound2, maxval=bound2)
    return w1_t, b1, w2_t, b2


def _reference(x, w1_t, b1, w2_t, b2, *, match_kernel_casts):
    if match_kernel_casts:
        xb = x.astype(jnp.bfloat16).astype(jnp.float32)
        w1b = w1_t.astype(jnp.bfloat16).astype(jnp.float32)
        w2b = w2_t.astype(jnp.bfloat16).astype(jnp.float32)
        h = jnp.maximum(xb @ w1b + b1, 0.0)
        u = h.astype(jnp.bfloat16).astype(jnp.float32) @ w2b + b2
        return u.astype(jnp.bfloat16).astype(jnp.float32)   # kernel stores bf16
    h = jnp.maximum(x @ w1_t + b1, 0.0)
    return h @ w2_t + b2


if __name__ == "__main__":
    D_in, H1, OUT = 32, 64, 2
    key = jax.random.PRNGKey(0)
    kx, kx2, kp = jax.random.split(key, 3)

    w1_t, b1, w2_t, b2 = init_params(kp, D_in, H1, OUT)
    params = prepare_params(w1_t, b1, w2_t, b2)   # one-time weight prep (outside hot path)

    # Small shape consistent with the module spec (batch=8, D_in=32, H1=64).
    x_small = jax.random.normal(kx, (8, D_in), jnp.float32)
    u_small = jax.block_until_ready(two_layer_net(x_small, params))
    assert u_small.shape == (8, OUT)
    assert jnp.allclose(
        u_small, _reference(x_small, w1_t, b1, w2_t, b2, match_kernel_casts=True),
        atol=1e-2, rtol=1e-2)
    assert jnp.allclose(
        u_small, _reference(x_small, w1_t, b1, w2_t, b2, match_kernel_casts=False),
        atol=5e-2, rtol=5e-2)

    # Larger batch to exercise the multi-tile pipelined path (grid of 4 steps).
    x_big = jax.random.normal(kx2, (4096, D_in), jnp.float32)
    u_big = jax.block_until_ready(two_layer_net(x_big, params))
    assert u_big.shape == (4096, OUT)
    assert jnp.allclose(
        u_big, _reference(x_big, w1_t, b1, w2_t, b2, match_kernel_casts=True),
        atol=1e-2, rtol=1e-2)

    print("KERNEL_OK")
</pallas_src>

<mosaic_0001>
module attributes {stable_mosaic.version = 11 : i64} {
  func.func @_mlp_kernel(%arg0: i32, %arg1: memref<8x32xf32, #tpu.memory_space<vmem>>, %arg2: memref<32x64xbf16, #tpu.memory_space<vmem>>, %arg3: memref<1x64xf32, #tpu.memory_space<vmem>>, %arg4: memref<64x128xbf16, #tpu.memory_space<vmem>>, %arg5: memref<1x128xf32, #tpu.memory_space<vmem>>, %arg6: memref<8x128xbf16, #tpu.memory_space<vmem>>) attributes {dimension_semantics = [#tpu.dimension_semantics<parallel>], iteration_bounds = array<i64: 1>, scalar_prefetch = 0 : i64, scratch_operands = 0 : i64, tpu.core_type = #tpu.core_type<tc>, window_params = [{transform_indices = @transform_0, window_bounds = array<i64: 8, 32>}, {pipeline_mode = #tpu.pipeline_mode<synchronous>, transform_indices = @transform_1, window_bounds = array<i64: 32, 64>}, {pipeline_mode = #tpu.pipeline_mode<synchronous>, transform_indices = @transform_2, window_bounds = array<i64: 1, 64>}, {pipeline_mode = #tpu.pipeline_mode<synchronous>, transform_indices = @transform_3, window_bounds = array<i64: 64, 128>}, {pipeline_mode = #tpu.pipeline_mode<synchronous>, transform_indices = @transform_4, window_bounds = array<i64: 1, 128>}, {transform_indices = @transform_5, window_bounds = array<i64: 8, 128>}]} {
    %c0 = arith.constant 0 : index
    %c0_0 = arith.constant 0 : index
    %0 = vector.load %arg1[%c0, %c0_0] : memref<8x32xf32, #tpu.memory_space<vmem>>, vector<8x32xf32>
    %1 = arith.truncf %0 : vector<8x32xf32> to vector<8x32xbf16>
    %c0_1 = arith.constant 0 : index
    %c0_2 = arith.constant 0 : index
    %2 = vector.load %arg2[%c0_1, %c0_2] : memref<32x64xbf16, #tpu.memory_space<vmem>>, vector<32x64xbf16>
    %cst = arith.constant dense<0.000000e+00> : vector<8x64xf32>
    %3 = tpu.matmul %1, %2, %cst {dimension_numbers = #tpu.dot_dimension_numbers<[1], [0], [0], [1], [0, 0, 1, 1], [], []>} : vector<8x32xbf16>, vector<32x64xbf16>, vector<8x64xf32> -> vector<8x64xf32>
    %c0_3 = arith.constant 0 : index
    %c0_4 = arith.constant 0 : index
    %4 = vector.load %arg3[%c0_3, %c0_4] : memref<1x64xf32, #tpu.memory_space<vmem>>, vector<1x64xf32>
    %5 = vector.broadcast %4 : vector<1x64xf32> to vector<8x64xf32>
    %6 = arith.addf %3, %5 : vector<8x64xf32>
    %cst_5 = arith.constant 0.000000e+00 : f32
    %7 = vector.broadcast %cst_5 : f32 to vector<8x64xf32>
    %8 = arith.maximumf %6, %7 : vector<8x64xf32>
    %9 = arith.truncf %8 : vector<8x64xf32> to vector<8x64xbf16>
    %c0_6 = arith.constant 0 : index
    %c0_7 = arith.constant 0 : index
    %10 = vector.load %arg4[%c0_6, %c0_7] : memref<64x128xbf16, #tpu.memory_space<vmem>>, vector<64x128xbf16>
    %cst_8 = arith.constant dense<0.000000e+00> : vector<8x128xf32>
    %11 = tpu.matmul %9, %10, %cst_8 {dimension_numbers = #tpu.dot_dimension_numbers<[1], [0], [0], [1], [0, 0, 1, 1], [], []>} : vector<8x64xbf16>, vector<64x128xbf16>, vector<8x128xf32> -> vector<8x128xf32>
    %c0_9 = arith.constant 0 : index
    %c0_10 = arith.constant 0 : index
    %12 = vector.load %arg5[%c0_9, %c0_10] : memref<1x128xf32, #tpu.memory_space<vmem>>, vector<1x128xf32>
    %13 = vector.broadcast %12 : vector<1x128xf32> to vector<8x128xf32>
    %14 = arith.addf %11, %13 : vector<8x128xf32>
    %15 = arith.truncf %14 : vector<8x128xf32> to vector<8x128xbf16>
    %c0_11 = arith.constant 0 : index
    %c0_12 = arith.constant 0 : index
    %16 = vector.load %arg6[%c0_11, %c0_12] : memref<8x128xbf16, #tpu.memory_space<vmem>>, vector<8x128xbf16>
    tpu.vector_store %arg6[%c0_11, %c0_12], %15 {strides = array<i32>} : memref<8x128xbf16, #tpu.memory_space<vmem>>, vector<8x128xbf16>,
    return
  }
  func.func @transform_0(%arg0: i32) -> (i32, i32) {
    %c0_i32 = arith.constant 0 : i32
    %c0_i32_0 = arith.constant 0 : i32
    return %arg0, %c0_i32 : i32, i32
  }
  func.func @transform_1(%arg0: i32) -> (i32, i32) {
    %c0_i32 = arith.constant 0 : i32
    %c0_i32_0 = arith.constant 0 : i32
    %c0_i32_1 = arith.constant 0 : i32
    return %c0_i32, %c0_i32_0 : i32, i32
  }
  func.func @transform_2(%arg0: i32) -> (i32, i32) {
    %c0_i32 = arith.constant 0 : i32
    %c0_i32_0 = arith.constant 0 : i32
    %c0_i32_1 = arith.constant 0 : i32
    return %c0_i32, %c0_i32_0 : i32, i32
  }
  func.func @transform_3(%arg0: i32) -> (i32, i32) {
    %c0_i32 = arith.constant 0 : i32
    %c0_i32_0 = arith.constant 0 : i32
    %c0_i32_1 = arith.constant 0 : i32
    return %c0_i32, %c0_i32_0 : i32, i32
  }
  func.func @transform_4(%arg0: i32) -> (i32, i32) {
    %c0_i32 = arith.constant 0 : i32
    %c0_i32_0 = arith.constant 0 : i32
    %c0_i32_1 = arith.constant 0 : i32
    return %c0_i32, %c0_i32_0 : i32, i32
  }
  func.func @transform_5(%arg0: i32) -> (i32, i32) {
    %c0_i32 = arith.constant 0 : i32
    %c0_i32_0 = arith.constant 0 : i32
    return %arg0, %c0_i32 : i32, i32
  }
}

</mosaic_0001>

<llo_original>
// kernel: tpu_custom_call.1
$region0: #{tpu_custom_call.1}
  #allocation0 [shape = 'u32[]', space=smem, size = 0x4, offset = 0x4, fixed_abs, tag = 'smem constant byte address 0x4 - core index']
  #allocation1 [shape = 'u32[72,128]{1,0:T(1,128)}', space=vmem, size = 0x9000, scoped, tag = 'internal scratch']
  %s0 = inlined_call_operand.hbm [shape: f32[8,32], index: 0, kind: input, shape index: {}]
  %s1 = inlined_call_operand.hbm [shape: bf16[32,64], index: 1, kind: input, shape index: {}]
  %s2 = inlined_call_operand.vmem [shape: f32[1,64], index: 2, kind: input, shape index: {}]
  %s3 = inlined_call_operand.hbm [shape: bf16[64,128], index: 3, kind: input, shape index: {}]
  %s4 = inlined_call_operand.vmem [shape: f32[1,128], index: 4, kind: input, shape index: {}]
  %s5 = inlined_call_operand.hbm [shape: bf16[8,128], index: 5, kind: output, shape index: {}]
  %s6 = sld [smem:[#allocation0]]
  $region42: #{tpu_custom_call.1} parent=0
    _
  %s8 = ssub.s32 1, %s6
  %s9 = scalar_select 0, %s8, %s6
  $region1: #{tpu_custom_call.1} parent=0
    #allocation2 [shape = 'u8[4096]{0}', space=vmem, size = 0x1000, scoped, tag = 'input window, operand 0, single buffered']
    #allocation3 [shape = 's32[1]{0}', space=sflag, size = 0x4, scoped, tag = 'scoped memory for tpu_custom_call.1']
    #allocation4 [shape = 's32[1]{0}', space=sflag, size = 0x4, scoped, tag = 'scoped memory for tpu_custom_call.1']
    #allocation5 [shape = 'u8[8192]{0}', space=vmem, size = 0x2000, scoped, tag = 'input window, operand 1, single buffered']
    #allocation6 [shape = 's32[1]{0}', space=sflag, size = 0x4, scoped, tag = 'scoped memory for tpu_custom_call.1']
    #allocation7 [shape = 'u8[16384]{0}', space=vmem, size = 0x4000, scoped, tag = 'input window, operand 3, single buffered']
    #allocation8 [shape = 'u8[2048]{0}', space=vmem, size = 0x800, scoped, tag = 'output window, operand 0, single buffered']
    %10 = vsyncpa [#allocation3], 0
    %11 = vsyncpa [#allocation6], 0
    %12 = vsyncpa [#allocation4], 0
    // Predicated region
    $region2: #{tpu_custom_call.1} parent=1 // pred_check
      _
    $region3: #{tpu_custom_call.1} parent=1 // pred_check_branch
      %14 = sbr.rel (0) target = $region5
    $region4: #{tpu_custom_call.1} parent=1 // pred_region
      %16 = vsyncadd [#allocation3], 0
      %s18 = sshll.u32 %s0, 4
      %s19 = int_to_ptr.hbm [resolvable:$true] %s18
      %s20 = sshll.u32 [#allocation2], 4
      %s21 = int_to_ptr.vmem [resolvable:$true] %s20
      %23 = dma.hbm_to_vmem [thread:$0]  %s19, 128, %s21, [#allocation3]
    $region5: #{tpu_custom_call.1} parent=1 // pred_fallthru
      _
    // Predicated region
    $region6: #{tpu_custom_call.1} parent=1 // pred_check
      _
    $region7: #{tpu_custom_call.1} parent=1 // pred_check_branch
      %25 = sbr.rel (0) target = $region9
    $region8: #{tpu_custom_call.1} parent=1 // pred_region
      %27 = vsyncadd [#allocation6], 0
      %s28 = sshll.u32 %s1, 4
      %s29 = int_to_ptr.hbm [resolvable:$true] %s28
      %s30 = sshll.u32 [#allocation5], 4
      %s31 = int_to_ptr.vmem [resolvable:$true] %s30
      %36 = dma.hbm_to_vmem [thread:$0]  %s29, 256, %s31, [#allocation6], 64, 64, 4
    $region9: #{tpu_custom_call.1} parent=1 // pred_fallthru
      _
    // Predicated region
    $region10: #{tpu_custom_call.1} parent=1 // pred_check
      _
    $region11: #{tpu_custom_call.1} parent=1 // pred_check_branch
      %38 = sbr.rel (0) target = $region13
    $region12: #{tpu_custom_call.1} parent=1 // pred_region
      _
    $region13: #{tpu_custom_call.1} parent=1 // pred_fallthru
      _
    // Predicated region
    $region14: #{tpu_custom_call.1} parent=1 // pred_check
      _
    $region15: #{tpu_custom_call.1} parent=1 // pred_check_branch
      %40 = sbr.rel (0) target = $region17
    $region16: #{tpu_custom_call.1} parent=1 // pred_region
      %42 = vsyncadd [#allocation6], 0
      %s43 = sshll.u32 %s3, 4
      %s44 = int_to_ptr.hbm [resolvable:$true] %s43
      %s45 = sshll.u32 [#allocation7], 4
      %s46 = int_to_ptr.vmem [resolvable:$true] %s45
      %51 = dma.hbm_to_vmem [thread:$0]  %s44, 512, %s46, [#allocation6], 64, 64, 4
    $region17: #{tpu_custom_call.1} parent=1 // pred_fallthru
      _
    // Predicated region
    $region18: #{tpu_custom_call.1} parent=1 // pred_check
      _
    $region19: #{tpu_custom_call.1} parent=1 // pred_check_branch
      %53 = sbr.rel (0) target = $region21
    $region20: #{tpu_custom_call.1} parent=1 // pred_region
      _
    $region21: #{tpu_custom_call.1} parent=1 // pred_fallthru
      _
    // Predicated region
    $region22: #{tpu_custom_call.1} parent=1 // pred_check
      _
    $region23: #{tpu_custom_call.1} parent=1 // pred_check_branch
      %55 = sbr.rel (0) target = $region25
    $region24: #{tpu_custom_call.1} parent=1 // pred_region
      %57 = dma.done [#allocation3], 128
    $region25: #{tpu_custom_call.1} parent=1 // pred_fallthru
      _
    // Predicated region
    $region26: #{tpu_custom_call.1} parent=1 // pred_check
      _
    $region27: #{tpu_custom_call.1} parent=1 // pred_check_branch
      %59 = sbr.rel (0) target = $region29
    $region28: #{tpu_custom_call.1} parent=1 // pred_region
      %61 = dma.done [#allocation6], 256
    $region29: #{tpu_custom_call.1} parent=1 // pred_fallthru
      _
    // Predicated region
    $region30: #{tpu_custom_call.1} parent=1 // pred_check
      _
    $region31: #{tpu_custom_call.1} parent=1 // pred_check_branch
      %63 = sbr.rel (0) target = $region33
    $region32: #{tpu_custom_call.1} parent=1 // pred_region
      %65 = dma.done [#allocation6], 512
    $region33: #{tpu_custom_call.1} parent=1 // pred_fallthru
      _
    %v67 = vld [vmem:[#allocation2] sm:$0xff]
    %v68 = vpack.c.bf16 %v67, %v67
    %v69 = vld [vmem:[#allocation5] sm:$0xf]
    %v70 = vld [vmem:[#allocation5 + $0x4] sm:$0xf]
    %v71 = vld [vmem:[#allocation5 + $0x8] sm:$0xf]
    %v72 = vld [vmem:[#allocation5 + $0xc] sm:$0xf]
    %v73 = vld [vmem:[%s2] sm:$0x1]
    %v75 = vperm.slane %v73, 0
    %v81 = vunpack.c.l.b16 %v69
    %v82 = vunpack.c.l.b16 %v70
    %v83 = vunpack.c.l.b16 %v71
    %v84 = vunpack.c.l.b16 %v72
    %v85 = vpack.c.b16 %v82, %v81
    %v86 = vpack.c.b16 %v84, %v83
    %vm89 = vcmask 261120
    %v91 = vsel %vm89, %v68, 0
    %93 = vmatpush.bf16.msra.mxu0 0
    %94 = vmatpush.bf16.msra.mxu0 0
    %95 = vmatpush.bf16.msra.mxu0 0
    %96 = vmatpush.bf16.msra.mxu0 0
    %97 = vmatpush.bf16.msra.mxu0 0
    %98 = vmatpush.bf16.msra.mxu0 0
    %99 = vmatpush.bf16.msra.mxu0 %v86
    %100 = vmatpush.bf16.msra.mxu0 %v85
    %101 = vmatmul.bf16.gmra.mxu0 %v91
    %v102 = vpop.f32.mrf.mxu0
    %v103 = vadd.f32 %v75, %v102
    %v104 = vpop.f32.mrf.mxu0
    %105 = vdwg.mxu0
    %v106 = vmax.f32 %v103, 0.0
    %v107 = vpack.c.bf16 %v106, %v106
    %v108 = vld [vmem:[#allocation7] sm:$0xf]
    %v109 = vld [vmem:[#allocation7 + $0x4] sm:$0xf]
    %v110 = vld [vmem:[#allocation7 + $0x8] sm:$0xf]
    %v111 = vld [vmem:[#allocation7 + $0xc] sm:$0xf]
    %v112 = vld [vmem:[#allocation7 + $0x10] sm:$0xf]
    %v113 = vld [vmem:[#allocation7 + $0x14] sm:$0xf]
    %v114 = vld [vmem:[#allocation7 + $0x18] sm:$0xf]
    %v115 = vld [vmem:[#allocation7 + $0x1c] sm:$0xf]
    %v116 = vld [vmem:[%s4] sm:$0x1]
    %v118 = vperm.slane %v116, 0
    %v128 = vunpack.c.l.b16 %v108
    %v129 = vunpack.c.l.b16 %v109
    %v130 = vunpack.c.l.b16 %v110
    %v131 = vunpack.c.l.b16 %v111
    %v132 = vunpack.c.l.b16 %v112
    %v133 = vunpack.c.l.b16 %v113
    %v134 = vunpack.c.l.b16 %v114
    %v135 = vunpack.c.l.b16 %v115
    %v136 = vpack.c.b16 %v129, %v128
    %v137 = vpack.c.b16 %v131, %v130
    %v138 = vpack.c.b16 %v133, %v132
    %v139 = vpack.c.b16 %v135, %v134
    %vm144 = vcmask 523264
    %v146 = vsel %vm144, %v107, 0
    %148 = vmatpush.bf16.msra.mxu0 0
    %149 = vmatpush.bf16.msra.mxu0 0
    %150 = vmatpush.bf16.msra.mxu0 0
    %151 = vmatpush.bf16.msra.mxu0 0
    %152 = vmatpush.bf16.msra.mxu0 %v139
    %153 = vmatpush.bf16.msra.mxu0 %v138
    %154 = vmatpush.bf16.msra.mxu0 %v137
    %155 = vmatpush.bf16.msra.mxu0 %v136
    %156 = vmatmul.bf16.gmra.mxu0 %v146
    %v157 = vpop.f32.mrf.mxu0
    %v158 = vadd.f32 %v118, %v157
    %v159 = vpop.f32.mrf.mxu0
    %160 = vdwg.mxu0
    %v161 = vpack.c.bf16 %v158, %v158
    %162 = vst [vmem:[#allocation8] sm:$0xf] %v161
    // Predicated region
    $region34: #{tpu_custom_call.1} parent=1 // pred_check
      _
    $region35: #{tpu_custom_call.1} parent=1 // pred_check_branch
      %164 = sbr.rel (0) target = $region37
    $region36: #{tpu_custom_call.1} parent=1 // pred_region
      %166 = vsyncadd [#allocation4], 0
      %s168 = sshll.u32 [#allocation8], 4
      %s169 = int_to_ptr.vmem [resolvable:$true] %s168
      %s170 = sshll.u32 %s5, 4
      %s171 = int_to_ptr.hbm [resolvable:$true] %s170
      %173 = dma.vmem_to_hbm [thread:$0]  %s169, 64, %s171, [#allocation4]
    $region37: #{tpu_custom_call.1} parent=1 // pred_fallthru
      _
    // Predicated region
    $region38: #{tpu_custom_call.1} parent=1 // pred_check
      _
    $region39: #{tpu_custom_call.1} parent=1 // pred_check_branch
      %175 = sbr.rel (0) target = $region41
    $region40: #{tpu_custom_call.1} parent=1 // pred_region
      %177 = dma.done [#allocation4], 64
    $region41: #{tpu_custom_call.1} parent=1 // pred_fallthru
      _
    %178 = vsyncpa [#allocation3], 1
    %179 = vsyncpa [#allocation6], 1
    %180 = vsyncpa [#allocation4], 1

</llo_original>
